<compile_context>
chip_gen: v7x
topology: tpu7x:2x2x1
jax: 0.10.0
libtpu: 0.0.40
codegen_flags: <defaults>
</compile_context>

<pallas_src>
import jax
import jax.numpy as jnp
from jax.experimental import pallas as pl
from jax.experimental.pallas import tpu as pltpu

EPS = 1e-5  # torch.nn.LayerNorm default eps
_INV_SQRT2 = 0.7071067811865476


def _layernorm(v, gamma, beta):
    # biased variance over last dim, as torch.nn.LayerNorm
    m = jnp.mean(v, axis=-1, keepdims=True)
    var = jnp.mean((v - m) ** 2, axis=-1, keepdims=True)
    return (v - m) * jax.lax.rsqrt(var + EPS) * gamma + beta


def _gelu_exact(v):
    # exact (erf-based) GELU, matching torch.nn.GELU() default
    return 0.5 * v * (1.0 + jax.lax.erf(v * jnp.float32(_INV_SQRT2)))


# ---------------------------------------------------------------------------
# Kernel: one (TR, L=128) lane-packed token tile of one batch element per step.
#   lanes [p*C : (p+1)*C] of row r hold channels of token r*P + p.
# ---------------------------------------------------------------------------
def hfa_kernel(x_ref, ca_ref, wall_ref, m_ref, vecs_ref, out_ref):
    L = x_ref.shape[-1]
    f32 = jnp.float32

    x_raw = x_ref[0]                              # (TR, L), original dtype
    x = x_raw.astype(f32)
    x_bf = x_raw.astype(jnp.bfloat16)             # bf16 only for the MXU
    ca = ca_ref[0]                                # (1, L) f32, per batch

    bpc = vecs_ref[0:1, :]                        # bp - mean(bp)   (1, L)
    gp = vecs_ref[1:2, :]                         # process LN gamma
    btp = vecs_ref[2:3, :]                        # process LN beta
    beff = vecs_ref[3:4, :]                       # spatial-att scalar bias

    m_mat = m_ref[...]                            # (L, L) bf16 mean matrix

    # Fused block-diagonal matmul (bf16 operands, f32 accumulate):
    #   [:,   :L ]  centered Linear output d_p
    #   [:, L:2L ]  per-token mean of x    mu_x
    #   [:,2L:3L ]  centered spatial logit s1c
    y = jnp.dot(x_bf, wall_ref[...], preferred_element_type=f32)

    d_p = y[:, 0 * L:1 * L] + bpc
    mu_x = y[:, 1 * L:2 * L]
    s1c = y[:, 2 * L:3 * L]

    # ---- process branch: segmented LayerNorm + GELU (tanh approx, EUP) -----
    var_p = jnp.dot((d_p * d_p).astype(jnp.bfloat16), m_mat,
                    preferred_element_type=f32)
    xp = d_p * jax.lax.rsqrt(var_p + EPS) * gp + btp
    xp = jax.nn.gelu(xp, approximate=True)

    # ---- spatial attention: LN folded into Linear(C,1) -> Sigmoid ----------
    d_x = x - mu_x
    var_x = jnp.dot((d_x * d_x).astype(jnp.bfloat16), m_mat,
                    preferred_element_type=f32)
    sa = jax.nn.sigmoid(s1c * jax.lax.rsqrt(var_x + EPS) + beff)

    # ---- enhanced = x + processed * channel_att * spatial_att --------------
    out_ref[0] = (x + xp * (ca * sa)).astype(out_ref.dtype)


def _pick_tile_rows(n_rows, cap):
    """Largest multiple-of-8 divisor of n_rows that is <= cap (or n_rows)."""
    if n_rows <= cap:
        return n_rows
    best = 0
    for t in range(8, cap + 1, 8):
        if n_rows % t == 0:
            best = t
    if best:
        return best
    # TODO(synk): no multiple-of-8 divisor of n_rows fits the cap; using the
    # full row count stays correct but may exceed the intended VMEM budget.
    return n_rows


def hfa_block(x, params, *, tile_rows=2048,
              vmem_limit_bytes=48 * 1024 * 1024):
    (wp, bp, gp, betap, gca, betaca, w1, b1, w2, b2,
     gsa, betasa, ws, bs) = params
    B, H, W, C = x.shape
    N = H * W
    f32 = jnp.float32
    x_flat = x.reshape(B, N, C)

    # ---- channel attention: tiny (B, C) work, plain JAX, f32, exact GELU ---
    x_pool = jnp.mean(x_flat.astype(f32), axis=1)                  # (B, C)
    h = _gelu_exact(jnp.dot(_layernorm(x_pool, gca, betaca), w1,
                            precision=jax.lax.Precision.HIGHEST) + b1)
    ca = jax.nn.sigmoid(jnp.dot(h, w2,
                                precision=jax.lax.Precision.HIGHEST) + b2)

    # ---- lane-dense packing: fold P tokens into the 128-lane axis ----------
    if C <= 128 and 128 % C == 0 and N % (128 // C) == 0:
        P = 128 // C
    else:
        P = 1  # TODO(synk): pad N / C when they don't pack cleanly into 128 lanes
    L = P * C
    Np = N // P
    x_p = x_flat.reshape(B, Np, L)          # contiguous => free reshape

    # ---- packed block-diagonal weights (built in f32, stored bf16) ---------
    eye_p = jnp.eye(P, dtype=f32)
    wp_f = wp.astype(f32)
    m_c = jnp.full((C, C), 1.0 / C, f32)                 # per-group mean
    w_d = jnp.kron(eye_p, wp_f - wp_f @ m_c)             # centered Linear
    m_blk = jnp.kron(eye_p, m_c)
    g_eff = (gsa.astype(f32) * ws.astype(f32)).reshape(C)
    g_cent = g_eff - jnp.sum(g_eff) / C
    g_blk = jnp.kron(eye_p, jnp.broadcast_to(g_cent[:, None], (C, C)))
    w_all = jnp.concatenate([w_d, m_blk, g_blk], axis=1).astype(jnp.bfloat16)
    m_bf = m_blk.astype(jnp.bfloat16)

    # ---- consolidated per-lane parameter vectors: one (8, L) f32 array -----
    def _rep(v):
        return jnp.tile(jnp.reshape(v.astype(f32), (1, C)), (1, P))

    b_eff = jnp.sum(betasa.astype(f32) * ws.astype(f32)) + jnp.reshape(bs, ())
    vecs = jnp.concatenate(
        [_rep(bp - jnp.mean(bp)), _rep(gp), _rep(betap),
         jnp.full((1, L), b_eff, f32), jnp.zeros((4, L), f32)], axis=0)

    ca_rep = jnp.tile(ca.astype(f32), (1, P)).reshape(B, 1, L)

    # ---- grid / tiling ------------------------------------------------------
    tr = _pick_tile_rows(Np, max(8, tile_rows))
    # v7x megacore: keep >= 2 grid steps so both TensorCores get work.
    if B * (Np // tr) < 2 and tr % 16 == 0:
        tr //= 2
    grid = (B, Np // tr)

    out = pl.pallas_call(
        hfa_kernel,
        out_shape=jax.ShapeDtypeStruct((B, Np, L), x.dtype),
        grid=grid,
        in_specs=[
            pl.BlockSpec((1, tr, L), lambda b, n: (b, n, 0)),    # x (packed)
            pl.BlockSpec((1, 1, L), lambda b, n: (b, 0, 0)),     # channel att
            pl.BlockSpec((L, 3 * L), lambda b, n: (0, 0)),       # fused weights
            pl.BlockSpec((L, L), lambda b, n: (0, 0)),           # mean matrix
            pl.BlockSpec((8, L), lambda b, n: (0, 0)),           # param vectors
        ],
        out_specs=pl.BlockSpec((1, tr, L), lambda b, n: (b, n, 0)),
        compiler_params=pltpu.CompilerParams(
            dimension_semantics=("parallel", "parallel"),
            vmem_limit_bytes=vmem_limit_bytes),
    )(x_p, ca_rep, w_all, m_bf, vecs)

    return out.reshape(B, H, W, C)


# ---------------------------------------------------------------------------
# Pure-JAX reference (exact erf GELU, f32) matching the PyTorch module.
# ---------------------------------------------------------------------------
def hfa_reference(x, params):
    (wp, bp, gp, betap, gca, betaca, w1, b1, w2, b2,
     gsa, betasa, ws, bs) = params
    xp = jnp.dot(x, wp, precision=jax.lax.Precision.HIGHEST) + bp
    xp = _gelu_exact(_layernorm(xp, gp, betap))
    x_pool = x.mean(axis=(1, 2))                                   # (B, C)
    h = _gelu_exact(jnp.dot(_layernorm(x_pool, gca, betaca), w1,
                            precision=jax.lax.Precision.HIGHEST) + b1)
    ca = jax.nn.sigmoid(jnp.dot(h, w2,
                                precision=jax.lax.Precision.HIGHEST) + b2)
    ca = ca[:, None, None, :]                                      # (B,1,1,C)
    sa = jax.nn.sigmoid(
        jnp.sum(_layernorm(x, gsa, betasa) * ws, axis=-1, keepdims=True)
        + bs[0, 0])                                                # (B,H,W,1)
    return x + xp * ca * sa


if __name__ == "__main__":
    B, H, W, C = 2, 16, 16, 32
    reduction_ratio = 8
    Cr = C // reduction_ratio

    key = jax.random.PRNGKey(0)
    ks = jax.random.split(key, 14)
    x = jax.random.normal(ks[0], (B, H, W, C), jnp.float32)

    # deterministic synthetic parameters (shapes follow HFA_block.__init__),
    # with non-trivial LayerNorm affines so the in-kernel folding is exercised
    wp = jax.random.normal(ks[1], (C, C), jnp.float32) / jnp.sqrt(C)
    bp = jax.random.normal(ks[2], (1, C), jnp.float32) * 0.02
    gp = 1.0 + 0.1 * jax.random.normal(ks[3], (1, C), jnp.float32)
    betap = 0.05 * jax.random.normal(ks[4], (1, C), jnp.float32)
    gca = 1.0 + 0.1 * jax.random.normal(ks[5], (1, C), jnp.float32)
    betaca = 0.05 * jax.random.normal(ks[6], (1, C), jnp.float32)
    w1 = jax.random.normal(ks[7], (C, Cr), jnp.float32) / jnp.sqrt(C)
    b1 = jax.random.normal(ks[8], (1, Cr), jnp.float32) * 0.02
    w2 = jax.random.normal(ks[9], (Cr, C), jnp.float32) / jnp.sqrt(Cr)
    b2 = jax.random.normal(ks[10], (1, C), jnp.float32) * 0.02
    gsa = 1.0 + 0.1 * jax.random.normal(ks[11], (1, C), jnp.float32)
    betasa = 0.05 * jax.random.normal(ks[12], (1, C), jnp.float32)
    ws = jax.random.normal(ks[13], (1, C), jnp.float32) / jnp.sqrt(C)
    bs = jnp.full((1, 1), 0.1, jnp.float32)

    params = (wp, bp, gp, betap, gca, betaca, w1, b1, w2, b2,
              gsa, betasa, ws, bs)

    # tile_rows=16 exercises multi-tile token tiling (grid = (2, 4)) here
    out = jax.block_until_ready(hfa_block(x, params, tile_rows=16))
    ref = hfa_reference(x, params)

    assert out.shape == (B, H, W, C)
    out_f32 = out.astype(jnp.float32)
    err = float(jnp.max(jnp.abs(out_f32 - ref)))
    assert jnp.allclose(out_f32, ref, atol=2e-2, rtol=2e-2), \
        f"mismatch vs reference (max abs err {err})"
    print("KERNEL_OK")
</pallas_src>

<mosaic_0001>
module attributes {stable_mosaic.version = 11 : i64} {
  func.func @hfa_kernel(%arg0: i32, %arg1: i32, %arg2: memref<1x16x128xf32, #tpu.memory_space<vmem>>, %arg3: memref<1x1x128xf32, #tpu.memory_space<vmem>>, %arg4: memref<128x384xbf16, #tpu.memory_space<vmem>>, %arg5: memref<128x128xbf16, #tpu.memory_space<vmem>>, %arg6: memref<8x128xf32, #tpu.memory_space<vmem>>, %arg7: memref<1x16x128xf32, #tpu.memory_space<vmem>>) attributes {dimension_semantics = [#tpu.dimension_semantics<parallel>, #tpu.dimension_semantics<parallel>], iteration_bounds = array<i64: 2, 4>, scalar_prefetch = 0 : i64, scratch_operands = 0 : i64, tpu.core_type = #tpu.core_type<tc>, window_params = [{transform_indices = @transform_0, window_bounds = array<i64: 1, 16, 128>}, {transform_indices = @transform_1, window_bounds = array<i64: 1, 1, 128>}, {pipeline_mode = #tpu.pipeline_mode<synchronous>, transform_indices = @transform_2, window_bounds = array<i64: 128, 384>}, {pipeline_mode = #tpu.pipeline_mode<synchronous>, transform_indices = @transform_3, window_bounds = array<i64: 128, 128>}, {pipeline_mode = #tpu.pipeline_mode<synchronous>, transform_indices = @transform_4, window_bounds = array<i64: 8, 128>}, {transform_indices = @transform_5, window_bounds = array<i64: 1, 16, 128>}]} {
    %c0 = arith.constant 0 : index
    %c0_0 = arith.constant 0 : index
    %c0_1 = arith.constant 0 : index
    %0 = vector.load %arg2[%c0, %c0_0, %c0_1] : memref<1x16x128xf32, #tpu.memory_space<vmem>>, vector<1x16x128xf32>
    %1 = vector.shape_cast %0 : vector<1x16x128xf32> to vector<16x128xf32>
    %2 = arith.truncf %1 : vector<16x128xf32> to vector<16x128xbf16>
    %c0_2 = arith.constant 0 : index
    %c0_3 = arith.constant 0 : index
    %c0_4 = arith.constant 0 : index
    %3 = vector.load %arg3[%c0_2, %c0_3, %c0_4] : memref<1x1x128xf32, #tpu.memory_space<vmem>>, vector<1x1x128xf32>
    %4 = vector.shape_cast %3 : vector<1x1x128xf32> to vector<1x128xf32>
    %c0_5 = arith.constant 0 : index
    %c0_6 = arith.constant 0 : index
    %5 = vector.load %arg6[%c0_5, %c0_6] : memref<8x128xf32, #tpu.memory_space<vmem>>, vector<1x128xf32>
    %c1 = arith.constant 1 : index
    %c0_7 = arith.constant 0 : index
    %6 = vector.load %arg6[%c1, %c0_7] : memref<8x128xf32, #tpu.memory_space<vmem>>, vector<1x128xf32>
    %c2 = arith.constant 2 : index
    %c0_8 = arith.constant 0 : index
    %7 = vector.load %arg6[%c2, %c0_8] : memref<8x128xf32, #tpu.memory_space<vmem>>, vector<1x128xf32>
    %c3 = arith.constant 3 : index
    %c0_9 = arith.constant 0 : index
    %8 = vector.load %arg6[%c3, %c0_9] : memref<8x128xf32, #tpu.memory_space<vmem>>, vector<1x128xf32>
    %c0_10 = arith.constant 0 : index
    %c0_11 = arith.constant 0 : index
    %9 = vector.load %arg5[%c0_10, %c0_11] : memref<128x128xbf16, #tpu.memory_space<vmem>>, vector<128x128xbf16>
    %c0_12 = arith.constant 0 : index
    %c0_13 = arith.constant 0 : index
    %10 = vector.load %arg4[%c0_12, %c0_13] : memref<128x384xbf16, #tpu.memory_space<vmem>>, vector<128x384xbf16>
    %cst = arith.constant dense<0.000000e+00> : vector<16x384xf32>
    %11 = tpu.matmul %2, %10, %cst {dimension_numbers = #tpu.dot_dimension_numbers<[1], [0], [0], [1], [0, 0, 1, 1], [], []>} : vector<16x128xbf16>, vector<128x384xbf16>, vector<16x384xf32> -> vector<16x384xf32>
    %12 = vector.extract_strided_slice %11 {offsets = [0, 0], sizes = [16, 128], strides = [1, 1]} : vector<16x384xf32> to vector<16x128xf32>
    %13 = vector.broadcast %5 : vector<1x128xf32> to vector<16x128xf32>
    %14 = arith.addf %12, %13 : vector<16x128xf32>
    %15 = vector.extract_strided_slice %11 {offsets = [0, 128], sizes = [16, 128], strides = [1, 1]} : vector<16x384xf32> to vector<16x128xf32>
    %16 = vector.extract_strided_slice %11 {offsets = [0, 256], sizes = [16, 128], strides = [1, 1]} : vector<16x384xf32> to vector<16x128xf32>
    %17 = arith.mulf %14, %14 : vector<16x128xf32>
    %18 = arith.truncf %17 : vector<16x128xf32> to vector<16x128xbf16>
    %cst_14 = arith.constant dense<0.000000e+00> : vector<16x128xf32>
    %19 = tpu.matmul %18, %9, %cst_14 {dimension_numbers = #tpu.dot_dimension_numbers<[1], [0], [0], [1], [0, 0, 1, 1], [], []>} : vector<16x128xbf16>, vector<128x128xbf16>, vector<16x128xf32> -> vector<16x128xf32>
    %cst_15 = arith.constant 9.99999974E-6 : f32
    %20 = vector.broadcast %cst_15 : f32 to vector<16x128xf32>
    %21 = arith.addf %19, %20 : vector<16x128xf32>
    %22 = math.rsqrt %21 : vector<16x128xf32>
    %23 = arith.mulf %14, %22 : vector<16x128xf32>
    %24 = vector.broadcast %6 : vector<1x128xf32> to vector<16x128xf32>
    %25 = arith.mulf %23, %24 : vector<16x128xf32>
    %26 = vector.broadcast %7 : vector<1x128xf32> to vector<16x128xf32>
    %27 = arith.addf %25, %26 : vector<16x128xf32>
    %28 = arith.mulf %27, %27 : vector<16x128xf32>
    %29 = arith.mulf %27, %28 : vector<16x128xf32>
    %cst_16 = arith.constant 4.471500e-02 : f32
    %30 = vector.broadcast %cst_16 : f32 to vector<16x128xf32>
    %31 = arith.mulf %30, %29 : vector<16x128xf32>
    %32 = arith.addf %27, %31 : vector<16x128xf32>
    %cst_17 = arith.constant 0.797884583 : f32
    %33 = vector.broadcast %cst_17 : f32 to vector<16x128xf32>
    %34 = arith.mulf %33, %32 : vector<16x128xf32>
    %35 = math.tanh %34 : vector<16x128xf32>
    %cst_18 = arith.constant 1.000000e+00 : f32
    %36 = vector.broadcast %cst_18 : f32 to vector<16x128xf32>
    %37 = arith.addf %36, %35 : vector<16x128xf32>
    %cst_19 = arith.constant 5.000000e-01 : f32
    %38 = vector.broadcast %cst_19 : f32 to vector<16x128xf32>
    %39 = arith.mulf %38, %37 : vector<16x128xf32>
    %40 = arith.mulf %27, %39 : vector<16x128xf32>
    %41 = arith.subf %1, %15 : vector<16x128xf32>
    %42 = arith.mulf %41, %41 : vector<16x128xf32>
    %43 = arith.truncf %42 : vector<16x128xf32> to vector<16x128xbf16>
    %cst_20 = arith.constant dense<0.000000e+00> : vector<16x128xf32>
    %44 = tpu.matmul %43, %9, %cst_20 {dimension_numbers = #tpu.dot_dimension_numbers<[1], [0], [0], [1], [0, 0, 1, 1], [], []>} : vector<16x128xbf16>, vector<128x128xbf16>, vector<16x128xf32> -> vector<16x128xf32>
    %cst_21 = arith.constant 9.99999974E-6 : f32
    %45 = vector.broadcast %cst_21 : f32 to vector<16x128xf32>
    %46 = arith.addf %44, %45 : vector<16x128xf32>
    %47 = math.rsqrt %46 : vector<16x128xf32>
    %48 = arith.mulf %16, %47 : vector<16x128xf32>
    %49 = vector.broadcast %8 : vector<1x128xf32> to vector<16x128xf32>
    %50 = arith.addf %48, %49 : vector<16x128xf32>
    %51 = arith.negf %50 : vector<16x128xf32>
    %52 = math.exp %51 : vector<16x128xf32>
    %cst_22 = arith.constant 1.000000e+00 : f32
    %53 = vector.broadcast %cst_22 : f32 to vector<16x128xf32>
    %54 = arith.addf %53, %52 : vector<16x128xf32>
    %55 = arith.divf %53, %54 : vector<16x128xf32>
    %56 = vector.broadcast %4 : vector<1x128xf32> to vector<16x128xf32>
    %57 = arith.mulf %56, %55 : vector<16x128xf32>
    %58 = arith.mulf %40, %57 : vector<16x128xf32>
    %59 = arith.addf %1, %58 : vector<16x128xf32>
    %c0_23 = arith.constant 0 : index
    %c0_24 = arith.constant 0 : index
    %c0_25 = arith.constant 0 : index
    %60 = vector.load %arg7[%c0_23, %c0_24, %c0_25] : memref<1x16x128xf32, #tpu.memory_space<vmem>>, vector<1x16x128xf32>
    %61 = vector.shape_cast %60 : vector<1x16x128xf32> to vector<16x128xf32>
    %62 = vector.shape_cast %59 : vector<16x128xf32> to vector<1x16x128xf32>
    tpu.vector_store %arg7[%c0_23, %c0_24, %c0_25], %62 {strides = array<i32>} : memref<1x16x128xf32, #tpu.memory_space<vmem>>, vector<1x16x128xf32>,
    return
  }
  func.func @transform_0(%arg0: i32, %arg1: i32) -> (i32, i32, i32) {
    %c0_i32 = arith.constant 0 : i32
    %c0_i32_0 = arith.constant 0 : i32
    return %arg0, %arg1, %c0_i32 : i32, i32, i32
  }
  func.func @transform_1(%arg0: i32, %arg1: i32) -> (i32, i32, i32) {
    %c0_i32 = arith.constant 0 : i32
    %c0_i32_0 = arith.constant 0 : i32
    %c0_i32_1 = arith.constant 0 : i32
    return %arg0, %c0_i32, %c0_i32_0 : i32, i32, i32
  }
  func.func @transform_2(%arg0: i32, %arg1: i32) -> (i32, i32) {
    %c0_i32 = arith.constant 0 : i32
    %c0_i32_0 = arith.constant 0 : i32
    %c0_i32_1 = arith.constant 0 : i32
    return %c0_i32, %c0_i32_0 : i32, i32
  }
  func.func @transform_3(%arg0: i32, %arg1: i32) -> (i32, i32) {
    %c0_i32 = arith.constant 0 : i32
    %c0_i32_0 = arith.constant 0 : i32
    %c0_i32_1 = arith.constant 0 : i32
    return %c0_i32, %c0_i32_0 : i32, i32
  }
  func.func @transform_4(%arg0: i32, %arg1: i32) -> (i32, i32) {
    %c0_i32 = arith.constant 0 : i32
    %c0_i32_0 = arith.constant 0 : i32
    %c0_i32_1 = arith.constant 0 : i32
    return %c0_i32, %c0_i32_0 : i32, i32
  }
  func.func @transform_5(%arg0: i32, %arg1: i32) -> (i32, i32, i32) {
    %c0_i32 = arith.constant 0 : i32
    %c0_i32_0 = arith.constant 0 : i32
    return %arg0, %arg1, %c0_i32 : i32, i32, i32
  }
}

</mosaic_0001>

<llo_original>
// kernel: tpu_custom_call.1
$region0: #{tpu_custom_call.1}
  #allocation0 [shape = 'u32[]', space=smem, size = 0x4, offset = 0x4, fixed_abs, tag = 'smem constant byte address 0x4 - core index']
  #allocation1 [shape = 'u32[144,128]{1,0:T(1,128)}', space=vmem, size = 0x12000, scoped, tag = 'internal scratch']
  %s0 = inlined_call_operand.hbm [shape: f32[2,64,128], index: 0, kind: input, shape index: {}]
  %s1 = inlined_call_operand.vmem [shape: f32[2,1,128], index: 1, kind: input, shape index: {}]
  %s2 = inlined_call_operand.hbm [shape: bf16[128,384], index: 2, kind: input, shape index: {}]
  %s3 = inlined_call_operand.hbm [shape: bf16[128,128], index: 3, kind: input, shape index: {}]
  %s4 = inlined_call_operand.vmem [shape: f32[8,128], index: 4, kind: input, shape index: {}]
  %s5 = inlined_call_operand.hbm [shape: f32[2,64,128], index: 5, kind: output, shape index: {}]
  %s6 = sld [smem:[#allocation0]]
  $region65: #{tpu_custom_call.1} parent=0
    _
  %s8 = ssub.s32 1, %s6
  %s9 = scalar_select 0, %s8, %s6
  $region1: #{tpu_custom_call.1} parent=0
    #allocation2 [shape = 'u8[16384]{0}', space=vmem, size = 0x4000, scoped, tag = 'input window, operand 0']
    #allocation3 [shape = 's32[2]{0}', space=sflag, size = 0x8, scoped, tag = 'scoped memory for tpu_custom_call.1']
    #allocation4 [shape = 's32[2]{0}', space=sflag, size = 0x8, scoped, tag = 'scoped memory for tpu_custom_call.1']
    #allocation5 [shape = 'u8[98304]{0}', space=vmem, size = 0x18000, scoped, tag = 'input window, operand 2, single buffered']
    #allocation6 [shape = 's32[1]{0}', space=sflag, size = 0x4, scoped, tag = 'scoped memory for tpu_custom_call.1']
    #allocation7 [shape = 'u8[32768]{0}', space=vmem, size = 0x8000, scoped, tag = 'input window, operand 3, single buffered']
    #allocation8 [shape = 'u8[16384]{0}', space=vmem, size = 0x4000, scoped, tag = 'output window, operand 0']
    %10 = vsyncpa [#allocation3], 0
    %s11 = scalar_lea.sflag [#allocation3], 1
    %12 = vsyncpa %s11, 0
    %13 = vsyncpa [#allocation6], 0
    %14 = vsyncpa [#allocation4], 0
    %s15 = scalar_lea.sflag [#allocation4], 1
    %16 = vsyncpa %s15, 0
    loop: start=0, step=1, limit=10
    $region2: #{tpu_custom_call.1} parent=1 // loop_pre_header
      _
    $region3: #{tpu_custom_call.1} parent=1 // loop_header
      %s18 = sphi 0, %s22
      %p19 = scmp.ge.s32.totalorder %s18, 10
      %s25 = sphi 0, %s37
      %s26 = sphi 0, %s33
      %s27 = sphi 0, %s25
      %s28 = sphi 0, %s26
      %s29 = sphi 0, %s27
      %s30 = sphi 0, %s28
      %s42 = sphi 0, %s44
      %s45 = sphi 0, %s42
      %s46 = sphi 0, %s45
      %s62 = sphi 0, %s46
      %s68 = sphi 0, %s70
      %s71 = sphi 0, %s68
      %s72 = sphi 0, %s71
      %s88 = sphi 0, %s72
      %s92 = sphi 0, %s92
      %s94 = sphi 0, %s92
      %s95 = sphi 0, %s94
      %s109 = sphi 0, %s95
      %s113 = sphi 0, %s113
      %s115 = sphi 0, %s113
      %s116 = sphi 0, %s115
      %s130 = sphi 0, %s116
      %s134 = sphi 0, %s134
      %s136 = sphi 0, %s134
      %s137 = sphi 0, %s136
      %s151 = sphi 0, %s137
      %s159 = sphi 0, %s161
      %s162 = sphi 0, %s159
      %s163 = sphi 0, %s162
      %s179 = sphi 0, %s163
    $region4: #{tpu_custom_call.1} parent=1 // loop_header_branch
      %21 = sbr.rel (%p19) target = $region8
    $region5: #{tpu_custom_call.1} parent=1 // loop_body
      %s23 = ssub.s32 %s18, 1
      %s24 = ssub.s32 %s18, 2
      %s31 = sadd.s32 1, %s26
      %p32 = scmp.ge.s32.totalorder %s31, 4
      %s33 = scalar_select %p32, 0, %s31
      %s34 = sadd.s32 1, %s25
      %s35 = scalar_select %p32, %s34, %s25
      %p36 = scmp.ge.s32.totalorder %s35, 2
      %s37 = scalar_select %p36, 0, %s35
      %s38 = ssub.s32 %s25, %s37
      %s39 = ssub.s32 %s26, %s33
      %s40 = sor.u32 %s38, %s39
      %p41 = scmp.eq.s32.totalorder %s40, 0
      %s43 = sadd.s32 %s42, 1
      %s44 = scalar_select %p41, %s42, %s43
      %p47 = pneg %p41
      %p48 = scmp.eq.s32.totalorder %s18, 7
      %p49 = por %p47, %p48
      %p50 = scmp.ne.s32.totalorder %s42, %s45
      %p51 = scmp.eq.s32.totalorder %s18, 0
      %p52 = por %p50, %p51
      %p53 = scmp.ne.s32.totalorder %s42, %s45
      %p54 = scmp.eq.s32.totalorder %s23, 7
      %p55 = por %p53, %p54
      %p56 = scmp.ne.s32.totalorder %s45, %s46
      %p57 = scmp.eq.s32.totalorder %s23, 0
      %p58 = por %p56, %p57
      %p59 = scmp.ne.s32.totalorder %s45, %s46
      %p60 = scmp.eq.s32.totalorder %s24, 7
      %p61 = por %p59, %p60
      %p63 = scmp.ne.s32.totalorder %s46, %s62
      %p64 = scmp.eq.s32.totalorder %s24, 0
      %p65 = por %p63, %p64
      %s66 = ssub.s32 %s25, %s37
      %p67 = scmp.eq.s32.totalorder %s66, 0
      %s69 = sadd.s32 %s68, 1
      %s70 = scalar_select %p67, %s68, %s69
      %p73 = pneg %p67
      %p74 = scmp.eq.s32.totalorder %s18, 7
      %p75 = por %p73, %p74
      %p76 = scmp.ne.s32.totalorder %s68, %s71
      %p77 = scmp.eq.s32.totalorder %s18, 0
      %p78 = por %p76, %p77
      %p79 = scmp.ne.s32.totalorder %s68, %s71
      %p80 = scmp.eq.s32.totalorder %s23, 7
      %p81 = por %p79, %p80
      %p82 = scmp.ne.s32.totalorder %s71, %s72
      %p83 = scmp.eq.s32.totalorder %s23, 0
      %p84 = por %p82, %p83
      %p85 = scmp.ne.s32.totalorder %s71, %s72
      %p86 = scmp.eq.s32.totalorder %s24, 7
      %p87 = por %p85, %p86
      %p89 = scmp.ne.s32.totalorder %s72, %s88
      %p90 = scmp.eq.s32.totalorder %s24, 0
      %p91 = por %p89, %p90
      %s93 = sadd.s32 %s92, 1
      %p96 = scmp.eq.s32.totalorder %s18, 7
      %p97 = scmp.ne.s32.totalorder %s92, %s94
      %p98 = scmp.eq.s32.totalorder %s18, 0
      %p99 = por %p97, %p98
      %p100 = scmp.ne.s32.totalorder %s92, %s94
      %p101 = scmp.eq.s32.totalorder %s23, 7
      %p102 = por %p100, %p101
      %p103 = scmp.ne.s32.totalorder %s94, %s95
      %p104 = scmp.eq.s32.totalorder %s23, 0
      %p105 = por %p103, %p104
      %p106 = scmp.ne.s32.totalorder %s94, %s95
      %p107 = scmp.eq.s32.totalorder %s24, 7
      %p108 = por %p106, %p107
      %p110 = scmp.ne.s32.totalorder %s95, %s109
      %p111 = scmp.eq.s32.totalorder %s24, 0
      %p112 = por %p110, %p111
      %s114 = sadd.s32 %s113, 1
      %p117 = scmp.eq.s32.totalorder %s18, 7
      %p118 = scmp.ne.s32.totalorder %s113, %s115
      %p119 = scmp.eq.s32.totalorder %s18, 0
      %p120 = por %p118, %p119
      %p121 = scmp.ne.s32.totalorder %s113, %s115
      %p122 = scmp.eq.s32.totalorder %s23, 7
      %p123 = por %p121, %p122
      %p124 = scmp.ne.s32.totalorder %s115, %s116
      %p125 = scmp.eq.s32.totalorder %s23, 0
      %p126 = por %p124, %p125
      %p127 = scmp.ne.s32.totalorder %s115, %s116
      %p128 = scmp.eq.s32.totalorder %s24, 7
      %p129 = por %p127, %p128
      %p131 = scmp.ne.s32.totalorder %s116, %s130
      %p132 = scmp.eq.s32.totalorder %s24, 0
      %p133 = por %p131, %p132
      %s135 = sadd.s32 %s134, 1
      %p138 = scmp.eq.s32.totalorder %s18, 7
      %p139 = scmp.ne.s32.totalorder %s134, %s136
      %p140 = scmp.eq.s32.totalorder %s18, 0
      %p141 = por %p139, %p140
      %p142 = scmp.ne.s32.totalorder %s134, %s136
      %p143 = scmp.eq.s32.totalorder %s23, 7
      %p144 = por %p142, %p143
      %p145 = scmp.ne.s32.totalorder %s136, %s137
      %p146 = scmp.eq.s32.totalorder %s23, 0
      %p147 = por %p145, %p146
      %p148 = scmp.ne.s32.totalorder %s136, %s137
      %p149 = scmp.eq.s32.totalorder %s24, 7
      %p150 = por %p148, %p149
      %p152 = scmp.ne.s32.totalorder %s137, %s151
      %p153 = scmp.eq.s32.totalorder %s24, 0
      %p154 = por %p152, %p153
      %s155 = ssub.s32 %s25, %s37
      %s156 = ssub.s32 %s26, %s33
      %s157 = sor.u32 %s155, %s156
      %p158 = scmp.eq.s32.totalorder %s157, 0
      %s160 = sadd.s32 %s159, 1
      %s161 = scalar_select %p158, %s159, %s160
      %p164 = pneg %p158
      %p165 = scmp.eq.s32.totalorder %s18, 7
      %p166 = por %p164, %p165
      %p167 = scmp.ne.s32.totalorder %s159, %s162
      %p168 = scmp.eq.s32.totalorder %s18, 0
      %p169 = por %p167, %p168
      %p170 = scmp.ne.s32.totalorder %s159, %s162
      %p171 = scmp.eq.s32.totalorder %s23, 7
      %p172 = por %p170, %p171
      %p173 = scmp.ne.s32.totalorder %s162, %s163
      %p174 = scmp.eq.s32.totalorder %s23, 0
      %p175 = por %p173, %p174
      %p176 = scmp.ne.s32.totalorder %s162, %s163
      %p177 = scmp.eq.s32.totalorder %s24, 7
      %p178 = por %p176, %p177
      %p180 = scmp.ne.s32.totalorder %s163, %s179
      %p181 = scmp.eq.s32.totalorder %s24, 0
      %p182 = por %p180, %p181
      %p183 = scmp.le.s32.totalorder 1, %s18
      %p184 = scmp.lt.s32.totalorder %s18, 9
      %p185 = pnand %p183, %p184
      %p186 = pneg %p185
      // Predicated region
      $region9: #{tpu_custom_call.1} parent=5 // pred_check
        _
      $region10: #{tpu_custom_call.1} parent=5 // pred_check_branch
        %188 = sbr.rel (%p185) target = $region12
      $region11: #{tpu_custom_call.1} parent=5 // pred_region
        %s189 = ssub.s32 %s18, 1
        // Predicated region
        $region13: #{tpu_custom_call.1} parent=11 // pred_check
          %p190 = pneg %p105
        $region14: #{tpu_custom_call.1} parent=11 // pred_check_branch
          %192 = sbr.rel (%p190) target = $region16
        $region15: #{tpu_custom_call.1} parent=11 // pred_region
          %s194 = ssub.s32 3072, 3072
          %195 = vsyncadd [#allocation6], %s194
          %s196 = sshll.u32 [#allocation5], 4
          %s197 = int_to_ptr.vmem [resolvable:$true] %s196
          %202 = dma.hbm_to_vmem [thread:$0]  %s2, 3072, %s197, [#allocation6], 192, 192, 12
        $region16: #{tpu_custom_call.1} parent=11 // pred_fallthru
          _
        // Predicated region
        $region17: #{tpu_custom_call.1} parent=11 // pred_check
          %p203 = pneg %p126
        $region18: #{tpu_custom_call.1} parent=11 // pred_check_branch
          %205 = sbr.rel (%p203) target = $region20
        $region19: #{tpu_custom_call.1} parent=11 // pred_region
          %s207 = ssub.s32 1024, 1024
          %208 = vsyncadd [#allocation6], %s207
          %s209 = sshll.u32 [#allocation7], 4
          %s210 = int_to_ptr.vmem [resolvable:$true] %s209
          %215 = dma.hbm_to_vmem [thread:$0]  %s3, 1024, %s210, [#allocation6], 64, 64, 4
        $region20: #{tpu_custom_call.1} parent=11 // pred_fallthru
          _
        // Predicated region
        $region21: #{tpu_custom_call.1} parent=11 // pred_check
          %p216 = pneg %p147
        $region22: #{tpu_custom_call.1} parent=11 // pred_check_branch
          %218 = sbr.rel (%p216) target = $region24
        $region23: #{tpu_custom_call.1} parent=11 // pred_region
          _
        $region24: #{tpu_custom_call.1} parent=11 // pred_fallthru
          _
      $region12: #{tpu_custom_call.1} parent=5 // pred_fallthru
        _
      %p219 = scmp.lt.s32.totalorder %s18, 8
      // Predicated region
      $region25: #{tpu_custom_call.1} parent=5 // pred_check
        %p220 = pneg %p219
      $region26: #{tpu_custom_call.1} parent=5 // pred_check_branch
        %222 = sbr.rel (%p220) target = $region28
      $region27: #{tpu_custom_call.1} parent=5 // pred_region
        // Predicated region
        $region29: #{tpu_custom_call.1} parent=27 // pred_check
          %p223 = pneg %p52
        $region30: #{tpu_custom_call.1} parent=27 // pred_check_branch
          %225 = sbr.rel (%p223) target = $region32
        $region31: #{tpu_custom_call.1} parent=27 // pred_region
          %s226 = sand.u32 %s42, 1
          %s227 = scalar_lea.sflag [#allocation3], %s226
          %s228 = sand.u32 %s42, 1
          %s229 = smul.addr %s228, 16
          %s230 = scalar_lea.vmem [#allocation2], %s229
          %s231 = smul.u32 2, %s26
          %s233 = ssub.s32 256, 256
          %234 = vsyncadd %s227, %s233
          %s235 = smul.addr %s25, 8
          %s236 = sadd.s32 %s231, %s235
          %s237 = smul.addr %s236, 128
          %s238 = scalar_lea.hbm %s0, %s237
          %s239 = sshll.u32 %s230, 4
          %s240 = int_to_ptr.vmem [resolvable:$true] %s239
          %245 = dma.hbm_to_vmem [thread:$0]  %s238, 256, %s240, %s227, 128, 128, 8
        $region32: #{tpu_custom_call.1} parent=27 // pred_fallthru
          _
        // Predicated region
        $region33: #{tpu_custom_call.1} parent=27 // pred_check
          %p246 = pneg %p78
        $region34: #{tpu_custom_call.1} parent=27 // pred_check_branch
          %248 = sbr.rel (%p246) target = $region36
        $region35: #{tpu_custom_call.1} parent=27 // pred_region
          %p249 = scmp.lt.s32.totalorder %s25, 1
          %s250 = scalar_select %p249, %s25, 1
          %s251 = scalar_lea.vmem %s1, %s250
        $region36: #{tpu_custom_call.1} parent=27 // pred_fallthru
          _
      $region28: #{tpu_custom_call.1} parent=5 // pred_fallthru
        _
      %p252 = scmp.le.s32.totalorder 1, %s18
      %p253 = scmp.lt.s32.totalorder %s18, 9
      %p254 = pnand %p252, %p253
      %p255 = pneg %p254
      // Predicated region
      $region37: #{tpu_custom_call.1} parent=5 // pred_check
        _
      $region38: #{tpu_custom_call.1} parent=5 // pred_check_branch
        %257 = sbr.rel (%p254) target = $region40
      $region39: #{tpu_custom_call.1} parent=5 // pred_region
        %s258 = ssub.s32 %s18, 1
        %s259 = sand.u32 %s45, 1
        %s260 = scalar_lea.sflag [#allocation3], %s259
        %s261 = sand.u32 %s45, 1
        %s262 = smul.addr %s261, 16
        %s263 = scalar_lea.vmem [#allocation2], %s262
        // Predicated region
        $region41: #{tpu_custom_call.1} parent=39 // pred_check
          %p264 = pneg %p58
        $region42: #{tpu_custom_call.1} parent=39 // pred_check_branch
          %266 = sbr.rel (%p264) target = $region44
        $region43: #{tpu_custom_call.1} parent=39 // pred_region
          %267 = dma.done %s260, 256
        $region44: #{tpu_custom_call.1} parent=39 // pred_fallthru
          _
        // Predicated region
        $region45: #{tpu_custom_call.1} parent=39 // pred_check
          %p268 = pneg %p105
        $region46: #{tpu_custom_call.1} parent=39 // pred_check_branch
          %270 = sbr.rel (%p268) target = $region48
        $region47: #{tpu_custom_call.1} parent=39 // pred_region
          %271 = dma.done [#allocation6], 3072
        $region48: #{tpu_custom_call.1} parent=39 // pred_fallthru
          _
        // Predicated region
        $region49: #{tpu_custom_call.1} parent=39 // pred_check
          %p272 = pneg %p126
        $region50: #{tpu_custom_call.1} parent=39 // pred_check_branch
          %274 = sbr.rel (%p272) target = $region52
        $region51: #{tpu_custom_call.1} parent=39 // pred_region
          %275 = dma.done [#allocation6], 1024
        $region52: #{tpu_custom_call.1} parent=39 // pred_fallthru
          _
        %s276 = sand.u32 %s45, 1
        %s277 = scalar_lea.sflag [#allocation3], %s276
        %s278 = sand.u32 %s45, 1
        %s279 = smul.addr %s278, 16
        %s280 = scalar_lea.vmem [#allocation2], %s279
        %p281 = pneg %p58
        %p282 = pneg %p55
        %p283 = scmp.lt.s32.totalorder %s27, 1
        %s284 = scalar_select %p283, %s27, 1
        %s285 = scalar_lea.vmem %s1, %s284
        %p286 = pneg %p84
        %p287 = pneg %p81
        %p288 = pneg %p105
        %p289 = pneg %p102
        %p290 = pneg %p126
        %p291 = pneg %p123
        %p292 = pneg %p147
        %p293 = pneg %p144
        %p294 = pneg %p175
        %p295 = pneg %p172
        %s296 = sand.u32 %s162, 1
        %s297 = scalar_lea.sflag [#allocation4], %s296
        %s298 = sand.u32 %s162, 1
        %s299 = smul.addr %s298, 16
        %s300 = scalar_lea.vmem [#allocation8], %s299
        %s301 = smul.u32 2, %s28
        %p302 = scmp.lt.s32.totalorder %s27, 1
        %s303 = scalar_select %p302, %s27, 1
        %s304 = scalar_lea.vmem %s1, %s303
        %s305 = smul.u32 2, %s28
        %v307 = vld [vmem:[%s263] sm:$0xff]
        %v308 = vld [vmem:[%s263 + $0x8] sm:$0xff]
        %v309 = vpack.c.bf16 %v308, %v307
        %v310 = vld [vmem:[%s304] sm:$0x1]
        %v311 = vld [vmem:[%s4] sm:$0x1]
        %v312 = vld [vmem:[%s4 + $0x1] sm:$0x1]
        %v313 = vld [vmem:[%s4 + $0x2] sm:$0x1]
        %v314 = vld [vmem:[%s4 + $0x3] sm:$0x1]
        %v315 = vld [vmem:[#allocation7] sm:$0xf]
        %v316 = vld [vmem:[#allocation7 + $0x4] sm:$0xf]
        %v317 = vld [vmem:[#allocation7 + $0x8] sm:$0xf]
        %v318 = vld [vmem:[#allocation7 + $0xc] sm:$0xf]
        %v319 = vld [vmem:[#allocation7 + $0x10] sm:$0xf]
        %v320 = vld [vmem:[#allocation7 + $0x14] sm:$0xf]
        %v321 = vld [vmem:[#allocation7 + $0x18] sm:$0xf]
        %v322 = vld [vmem:[#allocation7 + $0x1c] sm:$0xf]
        %v323 = vld [vmem:[#allocation7 + $0x20] sm:$0xf]
        %v324 = vld [vmem:[#allocation7 + $0x24] sm:$0xf]
        %v325 = vld [vmem:[#allocation7 + $0x28] sm:$0xf]
        %v326 = vld [vmem:[#allocation7 + $0x2c] sm:$0xf]
        %v327 = vld [vmem:[#allocation7 + $0x30] sm:$0xf]
        %v328 = vld [vmem:[#allocation7 + $0x34] sm:$0xf]
        %v329 = vld [vmem:[#allocation7 + $0x38] sm:$0xf]
        %v330 = vld [vmem:[#allocation7 + $0x3c] sm:$0xf]
        %v331 = vld [vmem:[#allocation5] sm:$0xff]
        %v332 = vld [vmem:[#allocation5 + $0x8] sm:$0xf]
        %v333 = vld [vmem:[#allocation5 + $0xc] sm:$0xff]
        %v334 = vld [vmem:[#allocation5 + $0x14] sm:$0xf]
        %v335 = vld [vmem:[#allocation5 + $0x18] sm:$0xff]
        %v336 = vld [vmem:[#allocation5 + $0x20] sm:$0xf]
        %v337 = vld [vmem:[#allocation5 + $0x24] sm:$0xff]
        %v338 = vld [vmem:[#allocation5 + $0x2c] sm:$0xf]
        %v339 = vld [vmem:[#allocation5 + $0x30] sm:$0xff]
        %v340 = vld [vmem:[#allocation5 + $0x38] sm:$0xf]
        %v341 = vld [vmem:[#allocation5 + $0x3c] sm:$0xff]
        %v342 = vld [vmem:[#allocation5 + $0x44] sm:$0xf]
        %v343 = vld [vmem:[#allocation5 + $0x48] sm:$0xff]
        %v344 = vld [vmem:[#allocation5 + $0x50] sm:$0xf]
        %v345 = vld [vmem:[#allocation5 + $0x54] sm:$0xff]
        %v346 = vld [vmem:[#allocation5 + $0x5c] sm:$0xf]
        %v347 = vld [vmem:[#allocation5 + $0x60] sm:$0xff]
        %v348 = vld [vmem:[#allocation5 + $0x68] sm:$0xf]
        %v349 = vld [vmem:[#allocation5 + $0x6c] sm:$0xff]
        %v350 = vld [vmem:[#allocation5 + $0x74] sm:$0xf]
        %v351 = vld [vmem:[#allocation5 + $0x78] sm:$0xff]
        %v352 = vld [vmem:[#allocation5 + $0x80] sm:$0xf]
        %v353 = vld [vmem:[#allocation5 + $0x84] sm:$0xff]
        %v354 = vld [vmem:[#allocation5 + $0x8c] sm:$0xf]
        %v355 = vld [vmem:[#allocation5 + $0x90] sm:$0xff]
        %v356 = vld [vmem:[#allocation5 + $0x98] sm:$0xf]
        %v357 = vld [vmem:[#allocation5 + $0x9c] sm:$0xff]
        %v358 = vld [vmem:[#allocation5 + $0xa4] sm:$0xf]
        %v359 = vld [vmem:[#allocation5 + $0xa8] sm:$0xff]
        %v360 = vld [vmem:[#allocation5 + $0xb0] sm:$0xf]
        %v361 = vld [vmem:[#allocation5 + $0xb4] sm:$0xff]
        %v362 = vld [vmem:[#allocation5 + $0xbc] sm:$0xf]
        %v395 = vunpack.c.l.b16 %v331
        %v396 = vunpack.c.h.b16 %v331
        %v397 = vunpack.c.l.b16 %v332
        %v398 = vunpack.c.l.b16 %v333
        %v399 = vunpack.c.h.b16 %v333
        %v400 = vunpack.c.l.b16 %v334
        %v401 = vunpack.c.l.b16 %v335
        %v402 = vunpack.c.h.b16 %v335
        %v403 = vunpack.c.l.b16 %v336
        %v404 = vunpack.c.l.b16 %v337
        %v405 = vunpack.c.h.b16 %v337
        %v406 = vunpack.c.l.b16 %v338
        %v407 = vunpack.c.l.b16 %v339
        %v408 = vunpack.c.h.b16 %v339
        %v409 = vunpack.c.l.b16 %v340
        %v410 = vunpack.c.l.b16 %v341
        %v411 = vunpack.c.h.b16 %v341
        %v412 = vunpack.c.l.b16 %v342
        %v413 = vunpack.c.l.b16 %v343
        %v414 = vunpack.c.h.b16 %v343
        %v415 = vunpack.c.l.b16 %v344
        %v416 = vunpack.c.l.b16 %v345
        %v417 = vunpack.c.h.b16 %v345
        %v418 = vunpack.c.l.b16 %v346
        %v419 = vunpack.c.l.b16 %v347
        %v420 = vunpack.c.h.b16 %v347
        %v421 = vunpack.c.l.b16 %v348
        %v422 = vunpack.c.l.b16 %v349
        %v423 = vunpack.c.h.b16 %v349
        %v424 = vunpack.c.l.b16 %v350
        %v425 = vunpack.c.l.b16 %v351
        %v426 = vunpack.c.h.b16 %v351
        %v427 = vunpack.c.l.b16 %v352
        %v428 = vunpack.c.l.b16 %v353
        %v429 = vunpack.c.h.b16 %v353
        %v430 = vunpack.c.l.b16 %v354
        %v431 = vunpack.c.l.b16 %v355
        %v432 = vunpack.c.h.b16 %v355
        %v433 = vunpack.c.l.b16 %v356
        %v434 = vunpack.c.l.b16 %v357
        %v435 = vunpack.c.h.b16 %v357
        %v436 = vunpack.c.l.b16 %v358
        %v437 = vunpack.c.l.b16 %v359
        %v438 = vunpack.c.h.b16 %v359
        %v439 = vunpack.c.l.b16 %v360
        %v440 = vunpack.c.l.b16 %v361
        %v441 = vunpack.c.h.b16 %v361
        %v442 = vunpack.c.l.b16 %v362
        %v443 = vpack.c.b16 %v398, %v395
        %v444 = vpack.c.b16 %v399, %v396
        %v445 = vpack.c.b16 %v400, %v397
        %v446 = vpack.c.b16 %v404, %v401
        %v447 = vpack.c.b16 %v405, %v402
        %v448 = vpack.c.b16 %v406, %v403
        %v449 = vpack.c.b16 %v410, %v407
        %v450 = vpack.c.b16 %v411, %v408
        %v451 = vpack.c.b16 %v412, %v409
        %v452 = vpack.c.b16 %v416, %v413
        %v453 = vpack.c.b16 %v417, %v414
        %v454 = vpack.c.b16 %v418, %v415
        %v455 = vpack.c.b16 %v422, %v419
        %v456 = vpack.c.b16 %v423, %v420
        %v457 = vpack.c.b16 %v424, %v421
        %v458 = vpack.c.b16 %v428, %v425
        %v459 = vpack.c.b16 %v429, %v426
        %v460 = vpack.c.b16 %v430, %v427
        %v461 = vpack.c.b16 %v434, %v431
        %v462 = vpack.c.b16 %v435, %v432
        %v463 = vpack.c.b16 %v436, %v433
        %v464 = vpack.c.b16 %v440, %v437
        %v465 = vpack.c.b16 %v441, %v438
        %v466 = vpack.c.b16 %v442, %v439
        %491 = vmatprep.subr.bf16.mxu0 %v444
        %492 = vmatpush1.bf16.msra.mxu0 %v443
        %493 = vmatprep.subr.bf16.mxu0 %v447
        %494 = vmatpush1.bf16.msra.mxu0 %v446
        %495 = vmatprep.subr.bf16.mxu0 %v450
        %496 = vmatpush1.bf16.msra.mxu0 %v449
        %497 = vmatprep.subr.bf16.mxu0 %v453
        %498 = vmatpush1.bf16.msra.mxu0 %v452
        %499 = vmatprep.subr.bf16.mxu0 %v456
        %500 = vmatpush1.bf16.msra.mxu0 %v455
        %501 = vmatprep.subr.bf16.mxu0 %v459
        %502 = vmatpush1.bf16.msra.mxu0 %v458
        %503 = vmatprep.subr.bf16.mxu0 %v462
        %504 = vmatpush1.bf16.msra.mxu0 %v461
        %505 = vmatprep.subr.bf16.mxu0 %v465
        %506 = vmatpush1.bf16.msra.mxu0 %v464
        %507 = vmatprep.subr.bf16.mxu0 0
        %508 = vmatpush1.bf16.msra.mxu0 0
        %509 = vmatprep.subr.bf16.mxu0 0
        %510 = vmatpush1.bf16.msra.mxu0 0
        %511 = vmatprep.subr.bf16.mxu0 0
        %512 = vmatpush1.bf16.msra.mxu0 0
        %513 = vmatprep.subr.bf16.mxu0 0
        %514 = vmatpush1.bf16.msra.mxu0 0
        %515 = vmatprep.subr.bf16.mxu0 0
        %516 = vmatpush1.bf16.msra.mxu0 0
        %517 = vmatprep.subr.bf16.mxu0 0
        %518 = vmatpush1.bf16.msra.mxu0 0
        %519 = vmatprep.subr.bf16.mxu0 0
        %520 = vmatpush1.bf16.msra.mxu0 0
        %521 = vmatprep.subr.bf16.mxu0 0
        %522 = vmatpush1.bf16.msra.mxu0 0
        %523 = vmatprep.mubr.bf16.mxu0 0
        %524 = vmatmul.mubr.bf16.gmra.mrb[0].mxu0 %v309
        %v525 = vpop.f32.mrb[0].mxu0
        %v526 = vadd.f32 0.0, %v525
        %v527 = vpop.f32.mrb[0].mxu0
        %v528 = vadd.f32 0.0, %v527
        %v529 = vpop.f32.mrb[0].mxu0
        %v530 = vadd.f32 0.0, %v529
        %v531 = vpop.f32.mrb[0].mxu0
        %v532 = vadd.f32 0.0, %v531
        %533 = vdwg.mxu0
        %534 = vmatprep.subr.bf16.mxu0 0
        %535 = vmatpush1.bf16.msra.mxu0 %v445
        %536 = vmatprep.subr.bf16.mxu0 0
        %537 = vmatpush1.bf16.msra.mxu0 %v448
        %538 = vmatprep.subr.bf16.mxu0 0
        %539 = vmatpush1.bf16.msra.mxu0 %v451
        %540 = vmatprep.subr.bf16.mxu0 0
        %541 = vmatpush1.bf16.msra.mxu0 %v454
        %542 = vmatprep.subr.bf16.mxu0 0
        %543 = vmatpush1.bf16.msra.mxu0 %v457
        %544 = vmatprep.subr.bf16.mxu0 0
        %545 = vmatpush1.bf16.msra.mxu0 %v460
        %546 = vmatprep.subr.bf16.mxu0 0
        %547 = vmatpush1.bf16.msra.mxu0 %v463
        %548 = vmatprep.subr.bf16.mxu0 0
        %549 = vmatpush1.bf16.msra.mxu0 %v466
        %550 = vmatprep.subr.bf16.mxu0 0
        %551 = vmatpush1.bf16.msra.mxu0 0
        %552 = vmatprep.subr.bf16.mxu0 0
        %553 = vmatpush1.bf16.msra.mxu0 0
        %554 = vmatprep.subr.bf16.mxu0 0
        %555 = vmatpush1.bf16.msra.mxu0 0
        %556 = vmatprep.subr.bf16.mxu0 0
        %557 = vmatpush1.bf16.msra.mxu0 0
        %558 = vmatprep.subr.bf16.mxu0 0
        %559 = vmatpush1.bf16.msra.mxu0 0
        %560 = vmatprep.subr.bf16.mxu0 0
        %561 = vmatpush1.bf16.msra.mxu0 0
        %562 = vmatprep.subr.bf16.mxu0 0
        %563 = vmatpush1.bf16.msra.mxu0 0
        %564 = vmatprep.subr.bf16.mxu0 0
        %565 = vmatpush1.bf16.msra.mxu0 0
        %566 = vmatprep.mubr.bf16.mxu0 0
        %567 = vmatmul.mubr.bf16.gmra.mrb[0].mxu0 %v309
        %v568 = vpop.f32.mrb[0].mxu0
        %v569 = vadd.f32 0.0, %v568
        %v570 = vpop.f32.mrb[0].mxu0
        %v571 = vpop.f32.mrb[0].mxu0
        %v572 = vadd.f32 0.0, %v571
        %v573 = vpop.f32.mrb[0].mxu0
        %574 = vdwg.mxu0
        %v575 = vlaneseq
        %v576 = vshrl.u32 %v575, 7
        %v577 = vsub.s32 0, %v576
        %v578 = vrot.slane %v311, %v577
        %v579 = vadd.f32 %v526, %v578
        %v580 = vadd.f32 %v530, %v578
        %v581 = vmul.f32 %v579, %v579
        %v582 = vmul.f32 %v580, %v580
        %v583 = vpack.c.bf16 %v582, %v581
        %v600 = vunpack.c.l.b16 %v315
        %v601 = vunpack.c.l.b16 %v316
        %v602 = vunpack.c.l.b16 %v317
        %v603 = vunpack.c.l.b16 %v318
        %v604 = vunpack.c.l.b16 %v319
        %v605 = vunpack.c.l.b16 %v320
        %v606 = vunpack.c.l.b16 %v321
        %v607 = vunpack.c.l.b16 %v322
        %v608 = vunpack.c.l.b16 %v323
        %v609 = vunpack.c.l.b16 %v324
        %v610 = vunpack.c.l.b16 %v325
        %v611 = vunpack.c.l.b16 %v326
        %v612 = vunpack.c.l.b16 %v327
        %v613 = vunpack.c.l.b16 %v328
        %v614 = vunpack.c.l.b16 %v329
        %v615 = vunpack.c.l.b16 %v330
        %v616 = vpack.c.b16 %v601, %v600
        %v617 = vpack.c.b16 %v603, %v602
        %v618 = vpack.c.b16 %v605, %v604
        %v619 = vpack.c.b16 %v607, %v606
        %v620 = vpack.c.b16 %v609, %v608
        %v621 = vpack.c.b16 %v611, %v610
        %v622 = vpack.c.b16 %v613, %v612
        %v623 = vpack.c.b16 %v615, %v614
        %632 = vmatprep.subr.bf16.mxu0 0
        %633 = vmatpush1.bf16.msra.mxu0 %v616
        %634 = vmatprep.subr.bf16.mxu0 0
        %635 = vmatpush1.bf16.msra.mxu0 %v617
        %636 = vmatprep.subr.bf16.mxu0 0
        %637 = vmatpush1.bf16.msra.mxu0 %v618
        %638 = vmatprep.subr.bf16.mxu0 0
        %639 = vmatpush1.bf16.msra.mxu0 %v619
        %640 = vmatprep.subr.bf16.mxu0 0
        %641 = vmatpush1.bf16.msra.mxu0 %v620
        %642 = vmatprep.subr.bf16.mxu0 0
        %643 = vmatpush1.bf16.msra.mxu0 %v621
        %644 = vmatprep.subr.bf16.mxu0 0
        %645 = vmatpush1.bf16.msra.mxu0 %v622
        %646 = vmatprep.subr.bf16.mxu0 0
        %647 = vmatpush1.bf16.msra.mxu0 %v623
        %648 = vmatprep.subr.bf16.mxu0 0
        %649 = vmatpush1.bf16.msra.mxu0 0
        %650 = vmatprep.subr.bf16.mxu0 0
        %651 = vmatpush1.bf16.msra.mxu0 0
        %652 = vmatprep.subr.bf16.mxu0 0
        %653 = vmatpush1.bf16.msra.mxu0 0
        %654 = vmatprep.subr.bf16.mxu0 0
        %655 = vmatpush1.bf16.msra.mxu0 0
        %656 = vmatprep.subr.bf16.mxu0 0
        %657 = vmatpush1.bf16.msra.mxu0 0
        %658 = vmatprep.subr.bf16.mxu0 0
        %659 = vmatpush1.bf16.msra.mxu0 0
        %660 = vmatprep.subr.bf16.mxu0 0
        %661 = vmatpush1.bf16.msra.mxu0 0
        %662 = vmatprep.subr.bf16.mxu0 0
        %663 = vmatpush1.bf16.msra.mxu0 0
        %664 = vmatprep.mubr.bf16.mxu0 0
        %665 = vmatmul.mubr.bf16.gmra.mrb[0].mxu0 %v583
        %v666 = vpop.f32.mrb[0].mxu0
        %v667 = vadd.f32 1e-05, %v666
        %v668 = vpop.f32.mrb[0].mxu0
        %v669 = vpop.f32.mrb[0].mxu0
        %v670 = vadd.f32 1e-05, %v669
        %v671 = vpop.f32.mrb[0].mxu0
        %672 = vdwg.mxu0
        %v673 = vrsqrt.pop %v667
        %v674 = vrsqrt.pop %v670
        %v675 = vmul.f32 %v579, %v673
        %v676 = vmul.f32 %v580, %v674
        %v677 = vlaneseq
        %v678 = vshrl.u32 %v677, 7
        %v679 = vsub.s32 0, %v678
        %v680 = vrot.slane %v312, %v679
        %v681 = vmul.f32 %v675, %v680
        %v682 = vmul.f32 %v676, %v680
        %v683 = vlaneseq
        %v684 = vshrl.u32 %v683, 7
        %v685 = vsub.s32 0, %v684
        %v686 = vrot.slane %v313, %v685
        %v687 = vadd.f32 %v681, %v686
        %v688 = vadd.f32 %v682, %v686
        %v689 = vmul.f32 %v687, %v687
        %v690 = vmul.f32 %v688, %v688
        %v691 = vmul.f32 %v687, %v689
        %v692 = vmul.f32 %v688, %v690
        %v693 = vmul.f32 %v691, 0.044715
        %v694 = vmul.f32 %v692, 0.044715
        %v695 = vadd.f32 %v687, %v693
        %v696 = vadd.f32 %v688, %v694
        %v697 = vmul.f32 %v695, 0.7978846
        %v698 = vmul.f32 %v696, 0.7978846
        %v699 = vtanh.pop %v697
        %v700 = vtanh.pop %v698
        %v701 = vadd.f32 %v699, 1.0
        %v702 = vadd.f32 %v700, 1.0
        %v703 = vmul.f32 %v701, 0.5
        %v704 = vmul.f32 %v702, 0.5
        %v705 = vmul.f32 %v687, %v703
        %v706 = vmul.f32 %v688, %v704
        %v707 = vsub.f32 %v307, %v528
        %v708 = vsub.f32 %v308, %v532
        %v709 = vmul.f32 %v707, %v707
        %v710 = vmul.f32 %v708, %v708
        %v711 = vpack.c.bf16 %v710, %v709
        %712 = vmatprep.subr.bf16.mxu0 0
        %713 = vmatpush1.bf16.msra.mxu0 %v616
        %714 = vmatprep.subr.bf16.mxu0 0
        %715 = vmatpush1.bf16.msra.mxu0 %v617
        %716 = vmatprep.subr.bf16.mxu0 0
        %717 = vmatpush1.bf16.msra.mxu0 %v618
        %718 = vmatprep.subr.bf16.mxu0 0
        %719 = vmatpush1.bf16.msra.mxu0 %v619
        %720 = vmatprep.subr.bf16.mxu0 0
        %721 = vmatpush1.bf16.msra.mxu0 %v620
        %722 = vmatprep.subr.bf16.mxu0 0
        %723 = vmatpush1.bf16.msra.mxu0 %v621
        %724 = vmatprep.subr.bf16.mxu0 0
        %725 = vmatpush1.bf16.msra.mxu0 %v622
        %726 = vmatprep.subr.bf16.mxu0 0
        %727 = vmatpush1.bf16.msra.mxu0 %v623
        %728 = vmatprep.subr.bf16.mxu0 0
        %729 = vmatpush1.bf16.msra.mxu0 0
        %730 = vmatprep.subr.bf16.mxu0 0
        %731 = vmatpush1.bf16.msra.mxu0 0
        %732 = vmatprep.subr.bf16.mxu0 0
        %733 = vmatpush1.bf16.msra.mxu0 0
        %734 = vmatprep.subr.bf16.mxu0 0
        %735 = vmatpush1.bf16.msra.mxu0 0
        %736 = vmatprep.subr.bf16.mxu0 0
        %737 = vmatpush1.bf16.msra.mxu0 0
        %738 = vmatprep.subr.bf16.mxu0 0
        %739 = vmatpush1.bf16.msra.mxu0 0
        %740 = vmatprep.subr.bf16.mxu0 0
        %741 = vmatpush1.bf16.msra.mxu0 0
        %742 = vmatprep.subr.bf16.mxu0 0
        %743 = vmatpush1.bf16.msra.mxu0 0
        %744 = vmatprep.mubr.bf16.mxu0 0
        %745 = vmatmul.mubr.bf16.gmra.mrb[0].mxu0 %v711
        %v746 = vpop.f32.mrb[0].mxu0
        %v747 = vadd.f32 1e-05, %v746
        %v748 = vpop.f32.mrb[0].mxu0
        %v749 = vpop.f32.mrb[0].mxu0
        %v750 = vadd.f32 1e-05, %v749
        %v751 = vpop.f32.mrb[0].mxu0
        %752 = vdwg.mxu0
        %v753 = vrsqrt.pop %v747
        %v754 = vrsqrt.pop %v750
        %v755 = vmul.f32 %v569, %v753
        %v756 = vmul.f32 %v572, %v754
        %v757 = vlaneseq
        %v758 = vshrl.u32 %v757, 7
        %v759 = vsub.s32 0, %v758
        %v760 = vrot.slane %v314, %v759
        %v761 = vadd.f32 %v755, %v760
        %v762 = vadd.f32 %v756, %v760
        %v763 = vxor.u32 %v761, 2147483648
        %v764 = vxor.u32 %v762, 2147483648
        %v765 = vmul.f32 %v763, 1.442695
        %v766 = vpow.pop %v765
        %v767 = vmul.f32 %v764, 1.442695
        %v768 = vpow.pop %v767
        %v769 = vadd.f32 %v766, 1.0
        %v770 = vadd.f32 %v768, 1.0
        %v771 = vrcp.pop %v769
        %v772 = vmul.f32 1.0, %v771
        %v773 = vrcp.pop %v770
        %v774 = vmul.f32 1.0, %v773
        %v776 = vlaneseq
        %v777 = vshrl.u32 %v776, 7
        %v778 = vsub.s32 0, %v777
        %v779 = vrot.slane %v310, %v778
        %v781 = vmul.f32 %v779, %v772
        %v782 = vmul.f32 %v779, %v774
        %v783 = vmul.f32 %v705, %v781
        %v784 = vmul.f32 %v706, %v782
        %v785 = vadd.f32 %v307, %v783
        %v786 = vadd.f32 %v308, %v784
        %787 = vst [vmem:[%s300] sm:$0xff] %v785
        %788 = vst [vmem:[%s300 + $0x8] sm:$0xff] %v786
        %s789 = sand.u32 %s162, 1
        %s790 = scalar_lea.sflag [#allocation4], %s789
        %s791 = sand.u32 %s162, 1
        %s792 = smul.addr %s791, 16
        %s793 = scalar_lea.vmem [#allocation8], %s792
        // Predicated region
        $region53: #{tpu_custom_call.1} parent=39 // pred_check
          %p794 = pneg %p172
        $region54: #{tpu_custom_call.1} parent=39 // pred_check_branch
          %796 = sbr.rel (%p794) target = $region56
        $region55: #{tpu_custom_call.1} parent=39 // pred_region
          %s797 = smul.u32 2, %s28
          %s799 = ssub.s32 256, 256
          %800 = vsyncadd %s790, %s799
          %s801 = smul.addr %s27, 8
          %s802 = sadd.s32 %s797, %s801
          %s803 = smul.addr %s802, 128
          %s804 = scalar_lea.hbm %s5, %s803
          %s805 = sshll.u32 %s793, 4
          %s806 = int_to_ptr.vmem [resolvable:$true] %s805
          %811 = dma.vmem_to_hbm [thread:$0]  %s806, 256, %s804, %s790, 128, 128, 8
        $region56: #{tpu_custom_call.1} parent=39 // pred_fallthru
          _
      $region40: #{tpu_custom_call.1} parent=5 // pred_fallthru
        _
      %p812 = scmp.le.s32.totalorder 2, %s18
      // Predicated region
      $region57: #{tpu_custom_call.1} parent=5 // pred_check
        %p813 = pneg %p812
      $region58: #{tpu_custom_call.1} parent=5 // pred_check_branch
        %815 = sbr.rel (%p813) target = $region60
      $region59: #{tpu_custom_call.1} parent=5 // pred_region
        %s816 = ssub.s32 %s18, 2
        // Predicated region
        $region61: #{tpu_custom_call.1} parent=59 // pred_check
          %p817 = pneg %p178
        $region62: #{tpu_custom_call.1} parent=59 // pred_check_branch
          %819 = sbr.rel (%p817) target = $region64
        $region63: #{tpu_custom_call.1} parent=59 // pred_region
          %s820 = sand.u32 %s163, 1
          %s821 = scalar_lea.sflag [#allocation4], %s820
          %s822 = sand.u32 %s163, 1
          %s823 = smul.addr %s822, 16
          %s824 = scalar_lea.vmem [#allocation8], %s823
          %825 = dma.done %s821, 256
        $region64: #{tpu_custom_call.1} parent=59 // pred_fallthru
          _
      $region60: #{tpu_custom_call.1} parent=5 // pred_fallthru
        _
    $region6: #{tpu_custom_call.1} parent=1 // loop_footer
      %s22 = sadd.s32 1, %s18
    $region7: #{tpu_custom_call.1} parent=1 // loop_footer_branch
      %17 = sbr.rel target = $region3
    $region8: #{tpu_custom_call.1} parent=1 // loop_exit
      _
    %826 = vsyncpa [#allocation3], 1
    %s827 = scalar_lea.sflag [#allocation3], 1
    %828 = vsyncpa %s827, 1
    %829 = vsyncpa [#allocation6], 1
    %830 = vsyncpa [#allocation4], 1
    %s831 = scalar_lea.sflag [#allocation4], 1
    %832 = vsyncpa %s831, 1

</llo_original>
